<compile_context>
chip_gen: v7x
topology: tpu7x:2x2x1
jax: 0.10.0
libtpu: 0.0.40
codegen_flags: <defaults>
</compile_context>

<pallas_src>
import functools

import jax
import jax.numpy as jnp
from jax.experimental import pallas as pl
from jax.experimental.pallas import tpu as pltpu


def _gce_kernel(logits_ref, tgt_ref, out_ref, *, q):
    # logits_ref: (TN, C) native dtype ; tgt_ref: (TN, 1) int32 ; out_ref: (1, TN) f32
    x = logits_ref[...].astype(jnp.float32)
    t = tgt_ref[...]                                     # (TN, 1) int32

    # numerically-stable log-sum-exp per row
    m = jnp.max(x, axis=1, keepdims=True)                # (TN, 1)
    e = jnp.exp(x - m)                                   # (TN, C)
    lse = jnp.log(jnp.sum(e, axis=1, keepdims=True)) + m  # (TN, 1)

    # gather logits[i, targets[i]] via a broadcast one-hot on the lane (class) axis
    col = jax.lax.broadcasted_iota(jnp.int32, (1, x.shape[1]), 1)    # (1, C)
    onehot = col == t                                                # (TN, C)
    x_t = jnp.sum(jnp.where(onehot, x, 0.0), axis=1, keepdims=True)  # (TN, 1)

    ce = lse - x_t                                       # per-sample cross entropy
    # Yg**q * q  ==  exp(q * (x_t - lse)) * q   (single exp, no pow/log round-trip)
    w = jnp.exp(jnp.float32(q) * (x_t - lse)) * jnp.float32(q)

    # lane-dense store: (TN, 1) column -> (1, TN) row (cheap XLU relayout)
    out_ref[...] = jnp.transpose(ce * w)


def _round_up(n, m):
    return (n + m - 1) // m * m


def _auto_block_n(N, C, itemsize):
    """Pick a batch tile: big enough to amortize per-step overhead, small enough
    to stay inside a conservative (~36 MiB) live-VMEM budget on all generations
    (v7x has only 64 MiB VMEM per TensorCore)."""
    mult = max(8, 32 // itemsize)            # sublane multiple for this dtype
    lanes = max(C, 128)                      # VMEM lane padding to 128
    # per-row live VMEM: 2 double-buffered native input rows + f32 working copy
    # + f32 exp temp + ~4 spilled (TN,1) f32 column temporaries
    per_row_vmem = lanes * (2 * itemsize + 2 * 4) + 4 * 128 * 4
    bn_max = max((36 << 20) // per_row_vmem, mult)
    bn_max = min(int(bn_max), 4096)
    bn_max = max(mult, bn_max // mult * mult)
    n_pad = _round_up(N, mult)
    num_blocks = -(-n_pad // bn_max)
    return _round_up(-(-n_pad // num_blocks), mult)


def generalized_ce_loss(logits, targets, q=0.7, *, block_n=None,
                        vmem_limit_bytes=48 * 1024 * 1024):
    """logits: [N, C] (any float dtype), targets: [N] int -> loss: [N] float32."""
    N, C = logits.shape
    itemsize = jnp.dtype(logits.dtype).itemsize
    mult = max(8, 32 // itemsize)
    if block_n is None:
        block_n = _auto_block_n(N, C, itemsize)
    block_n = max(mult, (int(block_n) // mult) * mult)

    n_pad = _round_up(N, block_n)
    num_blocks = n_pad // block_n

    # Arbitrary batch sizes: pad to a whole number of tiles (padded rows compute
    # on zero logits / class 0 and are sliced away afterwards).
    if n_pad != N:
        logits = jnp.pad(logits, ((0, n_pad - N), (0, 0)))
        targets = jnp.pad(targets, (0, n_pad - N))
    tgt2d = targets.astype(jnp.int32).reshape(n_pad, 1)

    out = pl.pallas_call(
        functools.partial(_gce_kernel, q=float(q)),
        out_shape=jax.ShapeDtypeStruct((num_blocks, block_n), jnp.float32),
        grid_spec=pltpu.PrefetchScalarGridSpec(
            num_scalar_prefetch=0,
            grid=(num_blocks,),
            in_specs=[
                # logits stay in their native dtype (bf16 halves HBM traffic)
                pl.BlockSpec((block_n, C), lambda i: (i, 0)),
                pl.BlockSpec((block_n, 1), lambda i: (i, 0)),
            ],
            out_specs=pl.BlockSpec((1, block_n), lambda i: (i, 0)),
        ),
        compiler_params=pltpu.CompilerParams(
            dimension_semantics=("parallel",),
            vmem_limit_bytes=vmem_limit_bytes,
        ),
    )(logits, tgt2d)
    return out.reshape(n_pad)[:N]


def _reference(logits, targets, q=0.7):
    logits = logits.astype(jnp.float32)
    lse = jax.nn.logsumexp(logits, axis=1)
    x_t = jnp.take_along_axis(logits, targets[:, None].astype(jnp.int32), axis=1)[:, 0]
    ce = lse - x_t
    yg = jnp.exp(x_t - lse)
    w = yg ** q * q
    return ce * w


if __name__ == "__main__":
    key = jax.random.PRNGKey(0)
    k1, k2 = jax.random.split(key)

    # case 1: batch=8, classes=16 (single tile, auto-sized)
    N, C = 8, 16
    logits = jax.random.normal(k1, (N, C), dtype=jnp.float32)
    targets = jax.random.randint(k2, (N,), 0, C, dtype=jnp.int32)
    loss = generalized_ce_loss(logits, targets, q=0.7)
    jax.block_until_ready(loss)
    ref = _reference(logits, targets, q=0.7)
    assert loss.shape == (N,)
    assert jnp.allclose(loss, ref, atol=1e-5, rtol=1e-5)

    # case 2: batch=20 with an explicit 8-row tile -> 3 tiles + 4 padded rows
    k3, k4 = jax.random.split(k2)
    N2, C2 = 20, 16
    logits2 = jax.random.normal(k3, (N2, C2), dtype=jnp.float32)
    targets2 = jax.random.randint(k4, (N2,), 0, C2, dtype=jnp.int32)
    loss2 = generalized_ce_loss(logits2, targets2, q=0.7, block_n=8)
    jax.block_until_ready(loss2)
    ref2 = _reference(logits2, targets2, q=0.7)
    assert loss2.shape == (N2,)
    assert jnp.allclose(loss2, ref2, atol=1e-5, rtol=1e-5)

    # case 3: native bf16 logits passthrough (in-kernel f32 upcast)
    k5, k6 = jax.random.split(k4)
    N3, C3 = 12, 16
    logits3 = jax.random.normal(k5, (N3, C3), dtype=jnp.bfloat16)
    targets3 = jax.random.randint(k6, (N3,), 0, C3, dtype=jnp.int32)
    loss3 = generalized_ce_loss(logits3, targets3, q=0.7)
    jax.block_until_ready(loss3)
    ref3 = _reference(logits3, targets3, q=0.7)
    assert loss3.shape == (N3,)
    assert jnp.allclose(loss3, ref3, atol=1e-4, rtol=1e-4)

    print("KERNEL_OK")
</pallas_src>

<mosaic_0001>
module attributes {stable_mosaic.version = 11 : i64} {
  func.func @_gce_kernel(%arg0: i32, %arg1: memref<8x16xf32, #tpu.memory_space<vmem>>, %arg2: memref<8x1xi32, #tpu.memory_space<vmem>>, %arg3: memref<1x8xf32, #tpu.memory_space<vmem>>) attributes {dimension_semantics = [#tpu.dimension_semantics<parallel>], iteration_bounds = array<i64: 1>, scalar_prefetch = 0 : i64, scratch_operands = 0 : i64, tpu.core_type = #tpu.core_type<tc>, window_params = [{transform_indices = @transform_0, window_bounds = array<i64: 8, 16>}, {transform_indices = @transform_1, window_bounds = array<i64: 8, 1>}, {transform_indices = @transform_2, window_bounds = array<i64: 1, 8>}]} {
    %c0 = arith.constant 0 : index
    %c0_0 = arith.constant 0 : index
    %0 = vector.load %arg1[%c0, %c0_0] : memref<8x16xf32, #tpu.memory_space<vmem>>, vector<8x16xf32>
    %c0_1 = arith.constant 0 : index
    %c0_2 = arith.constant 0 : index
    %1 = vector.load %arg2[%c0_1, %c0_2] : memref<8x1xi32, #tpu.memory_space<vmem>>, vector<8x1xi32>
    %cst = arith.constant dense<0xFF800000> : vector<8xf32>
    %2 = vector.multi_reduction <maximumf>, %0, %cst [1] : vector<8x16xf32> to vector<8xf32>
    %3 = vector.shape_cast %2 : vector<8xf32> to vector<8x1xf32>
    %4 = vector.broadcast %3 : vector<8x1xf32> to vector<8x16xf32>
    %5 = arith.subf %0, %4 : vector<8x16xf32>
    %6 = math.exp %5 : vector<8x16xf32>
    %cst_3 = arith.constant dense<0.000000e+00> : vector<8xf32>
    %7 = vector.multi_reduction <add>, %6, %cst_3 [1] : vector<8x16xf32> to vector<8xf32>
    %8 = vector.shape_cast %7 : vector<8xf32> to vector<8x1xf32>
    %9 = math.log %8 : vector<8x1xf32>
    %10 = arith.addf %9, %3 : vector<8x1xf32>
    %11 = tpu.iota {dimensions = array<i32: 1>} : vector<1x16xi32>
    %12 = vector.broadcast %11 : vector<1x16xi32> to vector<8x16xi32>
    %13 = vector.broadcast %1 : vector<8x1xi32> to vector<8x16xi32>
    %14 = arith.cmpi eq, %12, %13 : vector<8x16xi32>
    %cst_4 = arith.constant 0.000000e+00 : f32
    %15 = vector.broadcast %cst_4 : f32 to vector<8x16xf32>
    %16 = arith.select %14, %0, %15 : vector<8x16xi1>, vector<8x16xf32>
    %cst_5 = arith.constant dense<0.000000e+00> : vector<8xf32>
    %17 = vector.multi_reduction <add>, %16, %cst_5 [1] : vector<8x16xf32> to vector<8xf32>
    %18 = vector.shape_cast %17 : vector<8xf32> to vector<8x1xf32>
    %19 = arith.subf %10, %18 : vector<8x1xf32>
    %20 = arith.subf %18, %10 : vector<8x1xf32>
    %cst_6 = arith.constant 0.699999988 : f32
    %21 = vector.broadcast %cst_6 : f32 to vector<8x1xf32>
    %22 = arith.mulf %21, %20 : vector<8x1xf32>
    %23 = math.exp %22 : vector<8x1xf32>
    %cst_7 = arith.constant 0.699999988 : f32
    %24 = vector.broadcast %cst_7 : f32 to vector<8x1xf32>
    %25 = arith.mulf %23, %24 : vector<8x1xf32>
    %26 = arith.mulf %19, %25 : vector<8x1xf32>
    %27 = tpu.transpose %26, [1, 0] : vector<8x1xf32> -> vector<1x8xf32>
    %c0_8 = arith.constant 0 : index
    %c0_9 = arith.constant 0 : index
    %28 = vector.load %arg3[%c0_8, %c0_9] : memref<1x8xf32, #tpu.memory_space<vmem>>, vector<1x8xf32>
    tpu.vector_store %arg3[%c0_8, %c0_9], %27 {strides = array<i32>} : memref<1x8xf32, #tpu.memory_space<vmem>>, vector<1x8xf32>,
    return
  }
  func.func @transform_0(%arg0: i32) -> (i32, i32) {
    %c0_i32 = arith.constant 0 : i32
    %c0_i32_0 = arith.constant 0 : i32
    return %arg0, %c0_i32 : i32, i32
  }
  func.func @transform_1(%arg0: i32) -> (i32, i32) {
    %c0_i32 = arith.constant 0 : i32
    %c0_i32_0 = arith.constant 0 : i32
    return %arg0, %c0_i32 : i32, i32
  }
  func.func @transform_2(%arg0: i32) -> (i32, i32) {
    %c0_i32 = arith.constant 0 : i32
    %c0_i32_0 = arith.constant 0 : i32
    return %arg0, %c0_i32 : i32, i32
  }
}

</mosaic_0001>

<llo_original>
// kernel: tpu_custom_call.1
$region0: #{tpu_custom_call.1}
  #allocation0 [shape = 'u32[]', space=smem, size = 0x4, offset = 0x4, fixed_abs, tag = 'smem constant byte address 0x4 - core index']
  #allocation1 [shape = 'u32[144,128]{1,0:T(1,128)}', space=vmem, size = 0x12000, scoped, tag = 'internal scratch']
  %s0 = inlined_call_operand.vmem [shape: f32[8,16], index: 0, kind: input, shape index: {}]
  %s1 = inlined_call_operand.vmem [shape: s32[8,1], index: 1, kind: input, shape index: {}]
  %s2 = inlined_call_operand.hbm [shape: f32[1,8], index: 2, kind: output, shape index: {}]
  %s3 = sld [smem:[#allocation0]]
  $region18: #{tpu_custom_call.1} parent=0
    _
  %s5 = ssub.s32 1, %s3
  %s6 = scalar_select 0, %s5, %s3
  $region1: #{tpu_custom_call.1} parent=0
    #allocation2 [shape = 'u8[512]{0}', space=vmem, size = 0x400, scoped, tag = 'output window, operand 0, single buffered']
    #allocation3 [shape = 's32[1]{0}', space=sflag, size = 0x4, scoped, tag = 'scoped memory for tpu_custom_call.1']
    %7 = vsyncpa [#allocation3], 0
    // Predicated region
    $region2: #{tpu_custom_call.1} parent=1 // pred_check
      _
    $region3: #{tpu_custom_call.1} parent=1 // pred_check_branch
      %9 = sbr.rel (0) target = $region5
    $region4: #{tpu_custom_call.1} parent=1 // pred_region
      _
    $region5: #{tpu_custom_call.1} parent=1 // pred_fallthru
      _
    // Predicated region
    $region6: #{tpu_custom_call.1} parent=1 // pred_check
      _
    $region7: #{tpu_custom_call.1} parent=1 // pred_check_branch
      %11 = sbr.rel (0) target = $region9
    $region8: #{tpu_custom_call.1} parent=1 // pred_region
      _
    $region9: #{tpu_custom_call.1} parent=1 // pred_fallthru
      _
    %v12 = vld [vmem:[%s0] sm:$0xff]
    %v13 = vld [vmem:[%s1] sm:$0xff]
    %vm14 = vcmask 130048
    %v15 = vsel %vm14, %v12, -inf
    %16 = vmax.xlane.f32.xlu0 %v15
    %v17 = vpop.xlane.xlu0 %16
    %v18 = vsub.f32 %v12, %v17
    %v19 = vmul.f32 %v18, 1.442695
    %v20 = vpow.pop %v19
    %v21 = vsel %vm14, %v20, 0.0
    %22 = vadd.xlane.f32.xlu0 %v21
    %v23 = vpop.xlane.xlu0 %22
    %v24 = vlog2.pop %v23
    %v25 = vmul.f32 %v24, 0.6931472
    %v26 = vadd.f32 %v25, %v17
    %v27 = vlaneseq
    %v28 = vand.u32 %v27, 127
    %29 = vset.pattern.permute.xlu0 0
    %30 = vperm.xlu0 %29, %v13
    %v31 = vpop.permute.xlu0 %30
    %vm32 = vcmp.eq.s32.totalorder %v28, %v31
    %v33 = vsel %vm32, %v12, 0.0
    %v34 = vsel %vm14, %v33, 0.0
    %35 = vadd.xlane.f32.xlu0 %v34
    %v36 = vpop.xlane.xlu0 %35
    %v37 = vsub.f32 %v26, %v36
    %v38 = vsub.f32 %v36, %v26
    %v39 = vmul.f32 %v38, 0.7
    %v40 = vmul.f32 %v39, 1.442695
    %v41 = vpow.pop %v40
    %v42 = vmul.f32 %v41, 0.7
    %v43 = vmul.f32 %v37, %v42
    %44 = vxpose.xlu0.b32.start [1/16] %v43, 128
    %45 = vxpose.xlu0.b32.cont [2/16] 0.0, 128
    %46 = vxpose.xlu0.b32.cont [3/16] 0.0, 128
    %47 = vxpose.xlu0.b32.cont [4/16] 0.0, 128
    %48 = vxpose.xlu0.b32.cont [5/16] 0.0, 128
    %49 = vxpose.xlu0.b32.cont [6/16] 0.0, 128
    %50 = vxpose.xlu0.b32.cont [7/16] 0.0, 128
    %51 = vxpose.xlu0.b32.cont [8/16] 0.0, 128
    %52 = vxpose.xlu0.b32.cont [9/16] 0.0, 128
    %53 = vxpose.xlu0.b32.cont [10/16] 0.0, 128
    %54 = vxpose.xlu0.b32.cont [11/16] 0.0, 128
    %55 = vxpose.xlu0.b32.cont [12/16] 0.0, 128
    %56 = vxpose.xlu0.b32.cont [13/16] 0.0, 128
    %57 = vxpose.xlu0.b32.cont [14/16] 0.0, 128
    %58 = vxpose.xlu0.b32.cont [15/16] 0.0, 128
    %59 = vxpose.xlu0.b32.end [16/16] 0.0, 128
    %v60 = vpop.trf.xlu0
    %v61 = vpop.trf.xlu0
    %v62 = vpop.trf.xlu0
    %v63 = vpop.trf.xlu0
    %v64 = vpop.trf.xlu0
    %v65 = vpop.trf.xlu0
    %v66 = vpop.trf.xlu0
    %v67 = vpop.trf.xlu0
    %v68 = vpop.trf.xlu0
    %v69 = vpop.trf.xlu0
    %v70 = vpop.trf.xlu0
    %v71 = vpop.trf.xlu0
    %v72 = vpop.trf.xlu0
    %v73 = vpop.trf.xlu0
    %v74 = vpop.trf.xlu0
    %v75 = vpop.trf.xlu0
    %vm76 = vcmask 57344
    %77 = vst.msk [vmem:[#allocation2] sm:$0x1] %vm76, %v60
    // Predicated region
    $region10: #{tpu_custom_call.1} parent=1 // pred_check
      _
    $region11: #{tpu_custom_call.1} parent=1 // pred_check_branch
      %79 = sbr.rel (0) target = $region13
    $region12: #{tpu_custom_call.1} parent=1 // pred_region
      %s81 = ssub.s32 16, 16
      %82 = vsyncadd [#allocation3], %s81
      %s84 = sshll.u32 [#allocation2], 4
      %s85 = int_to_ptr.vmem [resolvable:$true] %s84
      %87 = dma.vmem_to_hbm [thread:$0]  %s85, 16, %s2, [#allocation3]
    $region13: #{tpu_custom_call.1} parent=1 // pred_fallthru
      _
    // Predicated region
    $region14: #{tpu_custom_call.1} parent=1 // pred_check
      _
    $region15: #{tpu_custom_call.1} parent=1 // pred_check_branch
      %89 = sbr.rel (0) target = $region17
    $region16: #{tpu_custom_call.1} parent=1 // pred_region
      %90 = dma.done [#allocation3], 16
    $region17: #{tpu_custom_call.1} parent=1 // pred_fallthru
      _
    %91 = vsyncpa [#allocation3], 1

</llo_original>
